<compile_context>
chip_gen: v5e
topology: v5e:2x2
jax: 0.10.0
libtpu: 0.0.40
codegen_flags: <defaults>
</compile_context>

<pallas_src>
import functools

import jax
import jax.numpy as jnp
from jax.experimental import pallas as pl
from jax.experimental.pallas import tpu as pltpu


def _round_up(n: int, m: int) -> int:
    return ((n + m - 1) // m) * m


@functools.lru_cache(maxsize=None)
def _tpu_generation() -> str:
    """Best-effort TPU generation sniffing; 'unknown' on failure."""
    try:
        kind = jax.devices()[0].device_kind.lower()
    except Exception:
        return "unknown"
    if "v5e" in kind or "v5 lite" in kind or "v5litepod" in kind:
        return "v5e"
    if "v6" in kind:
        return "v6e"
    if "v7" in kind:
        return "v7x"
    return "unknown"


def _vmem_limit_bytes(gen: str) -> int:
    # v5e / v6e have 128 MiB physical VMEM; v7x only 64 MiB per TensorCore.
    if gen in ("v5e", "v6e"):
        return 96 * 1024 * 1024
    return 48 * 1024 * 1024


def _epilogue_dtype(compute_dtype, gen: str):
    if jnp.dtype(compute_dtype) == jnp.dtype(jnp.float32):
        return jnp.float32
    # bf16 VPU/EUP path exists on v6e/v7x; keep f32 elsewhere (v5e has none).
    if gen in ("v6e", "v7x"):
        return jnp.bfloat16
    return jnp.float32


# Split a single mega-tile in two (for v7x megacore) only if it is at least
# this big; below that, per-step overhead would dominate again.
_MIN_SPLIT_TILE = 8192


def mdn_psi_kernel(x_ref, w1_ref, b1_ref, w2_ref, b2_ref, o_ref, *,
                   epilogue_dtype):
    # fc_in: [n_hidden, ndim_in] @ [ndim_in, tb] -> [n_hidden, tb], f32 accum.
    h = jnp.dot(w1_ref[...], x_ref[...], preferred_element_type=jnp.float32)
    # Bias add in f32 (VPU), then tanh in the epilogue dtype:
    #   bf16 on v6e/v7x halves EUP/VPU work and deletes a separate cast pass;
    #   f32 on v5e (no bf16 vector path) and in the full-f32 debug path.
    a = jnp.tanh((h + b1_ref[...]).astype(epilogue_dtype))
    # m_out: [ndim_out, n_hidden] @ [n_hidden, tb] -> [ndim_out, tb].
    # Feed the MXU in the compute dtype (no-op cast when epilogue == compute).
    a = a.astype(w2_ref.dtype)
    y = jnp.dot(w2_ref[...], a, preferred_element_type=jnp.float32)
    o_ref[...] = (y + b2_ref[...]).astype(o_ref.dtype)


def _mdn_psi_forward_fm(x_fm, w1, b1, w2, b2, *, tile_b, compute_dtype,
                        out_dtype):
    """Core implementation in feature-major ([feature, batch]) layout."""
    ndim_in, B = x_fm.shape
    n_hidden, _ = w1.shape
    ndim_out, _ = w2.shape
    if out_dtype is None:
        out_dtype = x_fm.dtype

    gen = _tpu_generation()
    epilogue_dtype = _epilogue_dtype(compute_dtype, gen)

    # Lane tiling: the batch tile must be a multiple of 128 (lane width).
    tile_b = max(128, _round_up(int(tile_b), 128))
    tb = min(tile_b, _round_up(B, 128))
    b_pad = _round_up(B, tb)
    # Prefer >=2 grid steps when the batch is big enough to split so the
    # "parallel" batch axis can shard across v7x's 2 TensorCores.
    if b_pad // tb == 1 and tb >= 2 * _MIN_SPLIT_TILE:
        tb = _round_up(tb // 2, 128)
        b_pad = _round_up(B, tb)

    x_c = x_fm.astype(compute_dtype)
    if b_pad != B:
        # Padded lanes compute garbage (W2@tanh(b1)+b2) and are sliced off
        # below; no in-kernel reduction over batch, so this is safe.
        x_c = jnp.pad(x_c, ((0, 0), (0, b_pad - B)))

    w1c = w1.astype(compute_dtype)
    w2c = w2.astype(compute_dtype)
    b1c = b1.reshape(n_hidden, 1).astype(jnp.float32)
    b2c = b2.reshape(ndim_out, 1).astype(jnp.float32)

    kernel = functools.partial(mdn_psi_kernel, epilogue_dtype=epilogue_dtype)

    out_fm = pl.pallas_call(
        kernel,
        out_shape=jax.ShapeDtypeStruct((ndim_out, b_pad), out_dtype),
        grid=(b_pad // tb,),
        in_specs=[
            # Batch-tiled input, double-buffered across grid steps.
            pl.BlockSpec((ndim_in, tb), lambda i: (0, i)),
            # Weights / biases: same block every step -> resident in VMEM.
            pl.BlockSpec((n_hidden, ndim_in), lambda i: (0, 0)),
            pl.BlockSpec((n_hidden, 1), lambda i: (0, 0)),
            pl.BlockSpec((ndim_out, n_hidden), lambda i: (0, 0)),
            pl.BlockSpec((ndim_out, 1), lambda i: (0, 0)),
        ],
        out_specs=pl.BlockSpec((ndim_out, tb), lambda i: (0, i)),
        compiler_params=pltpu.CompilerParams(
            dimension_semantics=("parallel",),
            vmem_limit_bytes=_vmem_limit_bytes(gen),
        ),
    )(x_c, w1c, b1c, w2c, b2c)

    if b_pad != B:
        out_fm = out_fm[:, :B]
    return out_fm


@functools.partial(jax.jit,
                   static_argnames=("tile_b", "compute_dtype", "out_dtype"))
def mdn_psi_forward_fm(x_fm, w1, b1, w2, b2, *, tile_b=65536,
                       compute_dtype=jnp.bfloat16, out_dtype=None):
    """Preferred entry point: x_fm [ndim_input, B] -> [ndim_output, B].

    No wrapper-side transposes; keep surrounding model activations in
    [feature, batch] layout to avoid extra HBM traffic.
    """
    return _mdn_psi_forward_fm(x_fm, w1, b1, w2, b2, tile_b=tile_b,
                               compute_dtype=compute_dtype,
                               out_dtype=out_dtype)


@functools.partial(jax.jit,
                   static_argnames=("tile_b", "compute_dtype", "out_dtype"))
def mdn_psi_forward(x, w1, b1, w2, b2, *, tile_b=65536,
                    compute_dtype=jnp.bfloat16, out_dtype=None):
    """PyTorch-interface wrapper: x [B, ndim_input] -> [B, ndim_output].

    jit-compiled as one unit so the pad/cast/transpose around the kernel fuse
    with it instead of making separate HBM round trips.

    w1: [n_hidden, ndim_input]  (fc_in.weight, [out, in]);   b1: [n_hidden]
    w2: [ndim_output, n_hidden] (m_out.weight, [out, in]);   b2: [ndim_output]
    """
    out_fm = _mdn_psi_forward_fm(x.T, w1, b1, w2, b2, tile_b=tile_b,
                                 compute_dtype=compute_dtype,
                                 out_dtype=out_dtype)
    return out_fm.T


def _reference(x, w1, b1, w2, b2):
    # Pure-JAX reference of the same forward pass, forced to high precision.
    with jax.default_matmul_precision("highest"):
        return jnp.tanh(x @ w1.T + b1) @ w2.T + b2


if __name__ == "__main__":
    # Module hyperparameters (MDN_psi-style small shapes).
    batch = 8
    ndim_input = 4
    n_hidden = 32
    ndim_output = 2

    key = jax.random.PRNGKey(0)
    kx, kw1, kb1, kw2, kb2, kx2 = jax.random.split(key, 6)

    x = jax.random.normal(kx, (batch, ndim_input), dtype=jnp.float32)

    # PyTorch-native parameter layout: weight is [out, in], bias is [out].
    w1 = jax.random.normal(kw1, (n_hidden, ndim_input), dtype=jnp.float32) * 0.1
    b1 = jax.random.normal(kb1, (n_hidden,), dtype=jnp.float32) * 0.1
    w2 = jax.random.normal(kw2, (ndim_output, n_hidden), dtype=jnp.float32) * 0.1
    b2 = jax.random.normal(kb2, (ndim_output,), dtype=jnp.float32) * 0.1

    ref = _reference(x, w1, b1, w2, b2)

    # 1) Default bf16 MXU path through the PyTorch [B, ndim] interface
    #    (bf16 forward precision is an explicit choice; loose tolerance).
    out_bf16 = jax.block_until_ready(mdn_psi_forward(x, w1, b1, w2, b2))
    assert out_bf16.shape == (batch, ndim_output)
    assert jnp.allclose(out_bf16, ref, atol=3e-2, rtol=3e-2)

    # 2) Full-f32 correctness/debug path: tight tolerance.
    out_f32 = jax.block_until_ready(
        mdn_psi_forward(x, w1, b1, w2, b2, compute_dtype=jnp.float32))
    assert jnp.allclose(out_f32, ref, atol=1e-4, rtol=1e-4)

    # 3) Feature-major entry point (no wrapper transposes), multi-tile grid:
    #    B=300 not a multiple of the tile, tile_b=100 rounded up to 128.
    x_big = jax.random.normal(kx2, (300, ndim_input), dtype=jnp.float32)
    ref_big = _reference(x_big, w1, b1, w2, b2)
    out_big_fm = jax.block_until_ready(
        mdn_psi_forward_fm(x_big.T, w1, b1, w2, b2, tile_b=100,
                           compute_dtype=jnp.float32))
    assert out_big_fm.shape == (ndim_output, 300)
    assert jnp.allclose(out_big_fm.T, ref_big, atol=1e-4, rtol=1e-4)

    # 4) bf16 output dtype option (halves output store bytes).
    out_bf16_store = jax.block_until_ready(
        mdn_psi_forward(x, w1, b1, w2, b2, out_dtype=jnp.bfloat16))
    assert out_bf16_store.dtype == jnp.bfloat16
    assert jnp.allclose(out_bf16_store.astype(jnp.float32), ref,
                        atol=5e-2, rtol=5e-2)

    print("KERNEL_OK")
</pallas_src>

<mosaic_0001>
module attributes {stable_mosaic.version = 11 : i64} {
  func.func @mdn_psi_kernel(%arg0: i32, %arg1: memref<4x128xbf16, #tpu.memory_space<vmem>>, %arg2: memref<32x4xbf16, #tpu.memory_space<vmem>>, %arg3: memref<32x1xf32, #tpu.memory_space<vmem>>, %arg4: memref<2x32xbf16, #tpu.memory_space<vmem>>, %arg5: memref<2x1xf32, #tpu.memory_space<vmem>>, %arg6: memref<2x128xf32, #tpu.memory_space<vmem>>) attributes {dimension_semantics = [#tpu.dimension_semantics<parallel>], iteration_bounds = array<i64: 1>, scalar_prefetch = 0 : i64, scratch_operands = 0 : i64, tpu.core_type = #tpu.core_type<tc>, window_params = [{transform_indices = @transform_0, window_bounds = array<i64: 4, 128>}, {pipeline_mode = #tpu.pipeline_mode<synchronous>, transform_indices = @transform_1, window_bounds = array<i64: 32, 4>}, {pipeline_mode = #tpu.pipeline_mode<synchronous>, transform_indices = @transform_2, window_bounds = array<i64: 32, 1>}, {pipeline_mode = #tpu.pipeline_mode<synchronous>, transform_indices = @transform_3, window_bounds = array<i64: 2, 32>}, {pipeline_mode = #tpu.pipeline_mode<synchronous>, transform_indices = @transform_4, window_bounds = array<i64: 2, 1>}, {transform_indices = @transform_5, window_bounds = array<i64: 2, 128>}]} {
    %c0 = arith.constant 0 : index
    %c0_0 = arith.constant 0 : index
    %0 = vector.load %arg2[%c0, %c0_0] : memref<32x4xbf16, #tpu.memory_space<vmem>>, vector<32x4xbf16>
    %c0_1 = arith.constant 0 : index
    %c0_2 = arith.constant 0 : index
    %1 = vector.load %arg1[%c0_1, %c0_2] : memref<4x128xbf16, #tpu.memory_space<vmem>>, vector<4x128xbf16>
    %cst = arith.constant dense<0.000000e+00> : vector<32x128xf32>
    %2 = tpu.matmul %0, %1, %cst {dimension_numbers = #tpu.dot_dimension_numbers<[1], [0], [0], [1], [0, 0, 1, 1], [], []>} : vector<32x4xbf16>, vector<4x128xbf16>, vector<32x128xf32> -> vector<32x128xf32>
    %c0_3 = arith.constant 0 : index
    %c0_4 = arith.constant 0 : index
    %3 = vector.load %arg3[%c0_3, %c0_4] : memref<32x1xf32, #tpu.memory_space<vmem>>, vector<32x1xf32>
    %4 = vector.broadcast %3 : vector<32x1xf32> to vector<32x128xf32>
    %5 = arith.addf %2, %4 : vector<32x128xf32>
    %6 = math.tanh %5 : vector<32x128xf32>
    %7 = arith.truncf %6 : vector<32x128xf32> to vector<32x128xbf16>
    %c0_5 = arith.constant 0 : index
    %c0_6 = arith.constant 0 : index
    %8 = vector.load %arg4[%c0_5, %c0_6] : memref<2x32xbf16, #tpu.memory_space<vmem>>, vector<2x32xbf16>
    %cst_7 = arith.constant dense<0.000000e+00> : vector<2x128xf32>
    %9 = tpu.matmul %8, %7, %cst_7 {dimension_numbers = #tpu.dot_dimension_numbers<[1], [0], [0], [1], [0, 0, 1, 1], [], []>} : vector<2x32xbf16>, vector<32x128xbf16>, vector<2x128xf32> -> vector<2x128xf32>
    %c0_8 = arith.constant 0 : index
    %c0_9 = arith.constant 0 : index
    %10 = vector.load %arg5[%c0_8, %c0_9] : memref<2x1xf32, #tpu.memory_space<vmem>>, vector<2x1xf32>
    %11 = vector.broadcast %10 : vector<2x1xf32> to vector<2x128xf32>
    %12 = arith.addf %9, %11 : vector<2x128xf32>
    %c0_10 = arith.constant 0 : index
    %c0_11 = arith.constant 0 : index
    %13 = vector.load %arg6[%c0_10, %c0_11] : memref<2x128xf32, #tpu.memory_space<vmem>>, vector<2x128xf32>
    tpu.vector_store %arg6[%c0_10, %c0_11], %12 {strides = array<i32>} : memref<2x128xf32, #tpu.memory_space<vmem>>, vector<2x128xf32>,
    return
  }
  func.func @transform_0(%arg0: i32) -> (i32, i32) {
    %c0_i32 = arith.constant 0 : i32
    %c0_i32_0 = arith.constant 0 : i32
    return %c0_i32, %arg0 : i32, i32
  }
  func.func @transform_1(%arg0: i32) -> (i32, i32) {
    %c0_i32 = arith.constant 0 : i32
    %c0_i32_0 = arith.constant 0 : i32
    %c0_i32_1 = arith.constant 0 : i32
    return %c0_i32, %c0_i32_0 : i32, i32
  }
  func.func @transform_2(%arg0: i32) -> (i32, i32) {
    %c0_i32 = arith.constant 0 : i32
    %c0_i32_0 = arith.constant 0 : i32
    %c0_i32_1 = arith.constant 0 : i32
    return %c0_i32, %c0_i32_0 : i32, i32
  }
  func.func @transform_3(%arg0: i32) -> (i32, i32) {
    %c0_i32 = arith.constant 0 : i32
    %c0_i32_0 = arith.constant 0 : i32
    %c0_i32_1 = arith.constant 0 : i32
    return %c0_i32, %c0_i32_0 : i32, i32
  }
  func.func @transform_4(%arg0: i32) -> (i32, i32) {
    %c0_i32 = arith.constant 0 : i32
    %c0_i32_0 = arith.constant 0 : i32
    %c0_i32_1 = arith.constant 0 : i32
    return %c0_i32, %c0_i32_0 : i32, i32
  }
  func.func @transform_5(%arg0: i32) -> (i32, i32) {
    %c0_i32 = arith.constant 0 : i32
    %c0_i32_0 = arith.constant 0 : i32
    return %c0_i32, %arg0 : i32, i32
  }
}

</mosaic_0001>

<llo_original>
// kernel: mdn_psi_forward.1
$region0: #{mdn_psi_forward.1}
  #allocation0 [shape = 'u32[]', space=smem, size = 0x4, offset = 0x4, fixed_abs, tag = 'smem constant byte address 0x4 - core index']
  #allocation1 [shape = 'u32[72,128]{1,0:T(1,128)}', space=vmem, size = 0x9000, scoped, tag = 'internal scratch']
  %s0 = inlined_call_operand.vmem [shape: bf16[4,128], index: 0, kind: input, shape index: {}]
  %s1 = inlined_call_operand.vmem [shape: bf16[32,4], index: 1, kind: input, shape index: {}]
  %s2 = inlined_call_operand.vmem [shape: f32[32,1], index: 2, kind: input, shape index: {}]
  %s3 = inlined_call_operand.vmem [shape: bf16[2,32], index: 3, kind: input, shape index: {}]
  %s4 = inlined_call_operand.vmem [shape: f32[2,1], index: 4, kind: input, shape index: {}]
  %s5 = inlined_call_operand.vmem [shape: f32[2,128], index: 5, kind: output, shape index: {}]
  %s6 = sld [smem:[#allocation0]]
  $region30: #{mdn_psi_forward.1} parent=0
    _
  %s8 = ssub.s32 1, %s6
  %s9 = scalar_select 0, %s8, %s6
  // Predicated region
  $region2: #{mdn_psi_forward.1} parent=0 // pred_check
    _
  $region3: #{mdn_psi_forward.1} parent=0 // pred_check_branch
    %11 = sbr.rel (0) target = $region5
  $region4: #{mdn_psi_forward.1} parent=0 // pred_region
    _
  $region5: #{mdn_psi_forward.1} parent=0 // pred_fallthru
    _
  // Predicated region
  $region6: #{mdn_psi_forward.1} parent=0 // pred_check
    _
  $region7: #{mdn_psi_forward.1} parent=0 // pred_check_branch
    %13 = sbr.rel (0) target = $region9
  $region8: #{mdn_psi_forward.1} parent=0 // pred_region
    _
  $region9: #{mdn_psi_forward.1} parent=0 // pred_fallthru
    _
  // Predicated region
  $region10: #{mdn_psi_forward.1} parent=0 // pred_check
    _
  $region11: #{mdn_psi_forward.1} parent=0 // pred_check_branch
    %15 = sbr.rel (0) target = $region13
  $region12: #{mdn_psi_forward.1} parent=0 // pred_region
    _
  $region13: #{mdn_psi_forward.1} parent=0 // pred_fallthru
    _
  // Predicated region
  $region14: #{mdn_psi_forward.1} parent=0 // pred_check
    _
  $region15: #{mdn_psi_forward.1} parent=0 // pred_check_branch
    %17 = sbr.rel (0) target = $region17
  $region16: #{mdn_psi_forward.1} parent=0 // pred_region
    _
  $region17: #{mdn_psi_forward.1} parent=0 // pred_fallthru
    _
  // Predicated region
  $region18: #{mdn_psi_forward.1} parent=0 // pred_check
    _
  $region19: #{mdn_psi_forward.1} parent=0 // pred_check_branch
    %19 = sbr.rel (0) target = $region21
  $region20: #{mdn_psi_forward.1} parent=0 // pred_region
    _
  $region21: #{mdn_psi_forward.1} parent=0 // pred_fallthru
    _
  %v21 = vld [vmem:[%s1] sm:$0xf]
  %v22 = vld [vmem:[%s1 + $0x4] sm:$0xf]
  %v23 = vld [vmem:[%s1 + $0x8] sm:$0xf]
  %v24 = vld [vmem:[%s1 + $0xc] sm:$0xf]
  %v25 = vld [vmem:[%s0] sm:$0x3]
  %v26 = vld [vmem:[%s2] sm:$0xff]
  %v27 = vld [vmem:[%s2 + $0x8] sm:$0xff]
  %v28 = vld [vmem:[%s2 + $0x10] sm:$0xff]
  %v29 = vld [vmem:[%s2 + $0x18] sm:$0xff]
  %31 = vset.pattern.permute.xlu0 0
  %32 = vperm.xlu0 %31, %v26
  %v33 = vpop.permute.xlu0 %32
  %36 = vset.pattern.permute.xlu0 0
  %37 = vperm.xlu0 %36, %v27
  %v38 = vpop.permute.xlu0 %37
  %41 = vset.pattern.permute.xlu0 0
  %42 = vperm.xlu0 %41, %v28
  %v43 = vpop.permute.xlu0 %42
  %46 = vset.pattern.permute.xlu0 0
  %47 = vperm.xlu0 %46, %v29
  %v48 = vpop.permute.xlu0 %47
  %v54 = vunpack.c.l.b16 %v21
  %v55 = vunpack.c.l.b16 %v22
  %v56 = vunpack.c.l.b16 %v23
  %v57 = vunpack.c.l.b16 %v24
  %v58 = vpack.c.b16 %v55, %v54
  %v59 = vpack.c.b16 %v57, %v56
  %vm60 = vcmask 31744
  %v62 = vsel %vm60, %v58, 0
  %v65 = vsel %vm60, %v59, 0
  %vm67 = vcmask 1041408
  %v69 = vsel %vm67, %v25, 0
  %71 = vmatpush.bf16.msra.mxu0 0
  %72 = vmatpush.bf16.msra.mxu0 0
  %73 = vmatpush.bf16.msra.mxu0 0
  %74 = vmatpush.bf16.msra.mxu0 0
  %75 = vmatpush.bf16.msra.mxu0 0
  %76 = vmatpush.bf16.msra.mxu0 0
  %77 = vmatpush.bf16.msra.mxu0 0
  %78 = vmatpush.bf16.msra.mxu0 %v69
  %79 = vmatmul.bf16.gmra.mxu0 %v62
  %v80 = vpop.f32.mrf.mxu0
  %v81 = vadd.f32 %v33, %v80
  %v82 = vpop.f32.mrf.mxu0
  %v83 = vadd.f32 %v38, %v82
  %84 = vmatmul.bf16.gmra.mxu0 %v65
  %v85 = vpop.f32.mrf.mxu0
  %v86 = vadd.f32 %v43, %v85
  %v87 = vpop.f32.mrf.mxu0
  %v88 = vadd.f32 %v48, %v87
  %89 = vdwg.mxu0
  %v90 = vtanh.pop %v81
  %v91 = vtanh.pop %v83
  %v92 = vtanh.pop %v86
  %v93 = vtanh.pop %v88
  %v94 = vpack.c.bf16 %v91, %v90
  %v95 = vpack.c.bf16 %v93, %v92
  %v96 = vld [vmem:[%s3] sm:$0x1]
  %v97 = vld [vmem:[%s4] sm:$0x3]
  %99 = vset.pattern.permute.xlu0 0
  %100 = vperm.xlu0 %99, %v97
  %v101 = vpop.permute.xlu0 %100
  %vm103 = vcmask 261120
  %v105 = vsel %vm103, %v96, 0
  %107 = vmatpush.bf16.msra.mxu0 0
  %108 = vmatpush.bf16.msra.mxu0 0
  %109 = vmatpush.bf16.msra.mxu0 0
  %110 = vmatpush.bf16.msra.mxu0 0
  %111 = vmatpush.bf16.msra.mxu0 0
  %112 = vmatpush.bf16.msra.mxu0 0
  %113 = vmatpush.bf16.msra.mxu0 %v95
  %114 = vmatpush.bf16.msra.mxu0 %v94
  %115 = vmatmul.bf16.gmra.mxu0 %v105
  %v116 = vpop.f32.mrf.mxu0
  %v117 = vadd.f32 %v101, %v116
  %v118 = vpop.f32.mrf.mxu0
  %119 = vdwg.mxu0
  %120 = vst [vmem:[%s5] sm:$0x3] %v117
  // Predicated region
  $region22: #{mdn_psi_forward.1} parent=0 // pred_check
    _
  $region23: #{mdn_psi_forward.1} parent=0 // pred_check_branch
    %122 = sbr.rel (0) target = $region25
  $region24: #{mdn_psi_forward.1} parent=0 // pred_region
    _
  $region25: #{mdn_psi_forward.1} parent=0 // pred_fallthru
    _
  // Predicated region
  $region26: #{mdn_psi_forward.1} parent=0 // pred_check
    _
  $region27: #{mdn_psi_forward.1} parent=0 // pred_check_branch
    %124 = sbr.rel (0) target = $region29
  $region28: #{mdn_psi_forward.1} parent=0 // pred_region
    _
  $region29: #{mdn_psi_forward.1} parent=0 // pred_fallthru
    _

</llo_original>
